<compile_context>
chip_gen: v6e
topology: v6e:2x2x1
jax: 0.10.0
libtpu: 0.0.40
codegen_flags: <defaults>
</compile_context>

<pallas_src>
import functools

import jax
import jax.numpy as jnp
from jax.experimental import pallas as pl
from jax.experimental.pallas import tpu as pltpu


def _round_up(n, m):
    return ((n + m - 1) // m) * m


def _cdiv(a, b):
    return -(-a // b)


@functools.lru_cache(maxsize=1)
def _physical_vmem_bytes():
    # Trace-time hardware query; fall back to the smallest per-core VMEM
    # across generations (v7x: 64 MiB) if the query is unavailable.
    try:
        info = pltpu.get_tpu_info()
        vmem = int(getattr(info, "vmem_capacity_bytes"))
        if vmem > 0:
            return vmem
    except Exception:
        pass
    return 64 << 20


def _codebook_kernel(x_ref, w_ref, o_ref):
    # One (T, Cp) row-tile of packed x times the resident (Cp, Op) weight.
    o_ref[...] = jnp.dot(
        x_ref[...], w_ref[...], preferred_element_type=jnp.float32
    ).astype(o_ref.dtype)


def _packed_matmul(x_packed, w_bd, row_tile):
    """y_packed = x_packed @ w_bd via a row-tiled, bandwidth-bound Pallas matmul."""
    Np, Cp = x_packed.shape
    Op = w_bd.shape[1]
    itemsize = jnp.dtype(x_packed.dtype).itemsize

    # Sublane granularity: (8,128) for 32-bit, (16,128) bf16, (32,128) int8.
    sub = max(8, 32 // itemsize)

    # VMEM layout pads the lane (last) dim to a multiple of 128.
    cp_pad = _round_up(Cp, 128)
    op_pad = _round_up(Op, 128)

    phys_vmem = _physical_vmem_bytes()
    usable = int(phys_vmem * 0.6)          # headroom for Mosaic internal scratch
    # 4-8 MiB input blocks sit at >=85% of the HBM roofline; smaller target on
    # v7x whose per-core VMEM is only 64 MiB.
    target_in_block = (8 << 20) if phys_vmem >= (100 << 20) else (6 << 20)

    # Per packed row: double-buffered input + double-buffered lane-padded output.
    per_row_bytes = 2 * (cp_pad + op_pad) * itemsize
    t_from_total = max(sub, (usable // per_row_bytes) // sub * sub)
    t_from_block = max(sub, (target_in_block // (cp_pad * itemsize)) // sub * sub)
    t_cap = min(t_from_total, t_from_block)

    T = min(_round_up(Np, sub), t_cap)
    if row_tile is not None:
        T = min(T, max(sub, _round_up(int(row_tile), sub)))
    T = max(sub, T)

    steps = _cdiv(Np, T)
    block_bytes = T * cp_pad * itemsize
    if steps == 1 and block_bytes > (2 << 20) and Np >= 2 * sub:
        # Split a large single block so both v7x TensorCores get work.
        T = _round_up(_cdiv(Np, 2), sub)
    elif steps > 1 and steps % 2 == 1:
        # Prefer an even step count for megacore load balance.
        T = _round_up(_cdiv(Np, steps + 1), sub)
    T = max(sub, T)
    steps = _cdiv(Np, T)

    # Explicit scoped-VMEM limit sized for the chosen blocks (input and output
    # blocks are double-buffered; the small block-diagonal weight is resident).
    needed = (
        2 * T * cp_pad + 2 * T * op_pad + 2 * _round_up(Cp, sub) * op_pad
    ) * itemsize
    vmem_limit = int(min(max(needed + (8 << 20), 32 << 20), phys_vmem * 0.85))

    cost = pl.CostEstimate(
        flops=2 * Np * Cp * Op,
        transcendentals=0,
        bytes_accessed=(Np * Cp + Np * Op + Cp * Op) * itemsize,
    )

    return pl.pallas_call(
        _codebook_kernel,
        out_shape=jax.ShapeDtypeStruct((Np, Op), x_packed.dtype),
        grid_spec=pltpu.PrefetchScalarGridSpec(
            num_scalar_prefetch=0,
            grid=(steps,),  # ragged tail handled by masked partial block
            in_specs=[
                pl.BlockSpec((T, Cp), lambda i: (i, 0)),
                pl.BlockSpec((Cp, Op), lambda i: (0, 0)),
            ],
            out_specs=pl.BlockSpec((T, Op), lambda i: (i, 0)),
        ),
        compiler_params=pltpu.CompilerParams(
            dimension_semantics=("parallel",),   # shard row tiles across TCs
            vmem_limit_bytes=vmem_limit,
        ),
        cost_estimate=cost,
    )(x_packed, w_bd)


@functools.partial(jax.jit, static_argnames=("row_tile",))
def codebook_mask_head(x, weight, row_tile=None):
    """Pallas implementation of TrainableCodebookMaskHead.forward.

    x      : (..., codebook_size)
    weight : (out_features, codebook_size)   -- PyTorch Linear weight layout
    returns: (...,) if out_features == 1 else (..., out_features)
    """
    *lead, C = x.shape
    O, Cw = weight.shape
    assert Cw == C

    x_flat = x.reshape(-1, C)  # free row-major reshape
    N = x_flat.shape[0]

    # NOTE: like the single-dtype PyTorch Linear, the weight is cast to x.dtype
    # for the matmul; accumulation stays fp32 via preferred_element_type.
    w_t = weight.astype(x.dtype).T  # (C, O)

    # ---- lane packing: fold P logical rows into one 128-lane packed row ----
    if C <= 128 and 128 % C == 0:
        P = 128 // C
    else:
        P = 1  # general fallback: C > 128 or C doesn't divide 128
    N_bulk = (N // P) * P

    if N_bulk == 0:
        # Fewer than P rows total: trivial plain-JAX matmul.
        y = jnp.dot(x_flat, w_t, preferred_element_type=jnp.float32).astype(x.dtype)
    else:
        Np = N_bulk // P
        Cp = P * C
        Op = P * O
        x_packed = x_flat[:N_bulk].reshape(Np, Cp)  # free reshape

        if P > 1:
            # Block-diagonal weight: packed_row @ w_bd == concat of per-row y.
            eye_p = jnp.eye(P, dtype=w_t.dtype)
            w_bd = (eye_p[:, None, :, None] * w_t[None, :, None, :]).reshape(Cp, Op)
        else:
            w_bd = w_t  # (C, O)

        y_bulk = _packed_matmul(x_packed, w_bd, row_tile).reshape(N_bulk, O)

        if N_bulk < N:
            # <= P-1 tail rows: finish in plain JAX so the bulk stays lane-dense.
            y_tail = jnp.dot(
                x_flat[N_bulk:], w_t, preferred_element_type=jnp.float32
            ).astype(x.dtype)
            y = jnp.concatenate([y_bulk, y_tail], axis=0)
        else:
            y = y_bulk

    y = y.reshape(*lead, O)
    if O == 1:
        y = y.reshape(*lead)  # matches torch .squeeze(-1) for out_features == 1
    return y


if __name__ == "__main__":
    key = jax.random.PRNGKey(0)
    kx, kw, kx2, kw2, kx3 = jax.random.split(key, 5)

    # --- main case: codebook over time-frequency bins, out_features == 1 ----
    batch, seq, freq, codebook_size, out_features = 2, 8, 16, 32, 1
    x = jax.random.normal(kx, (batch, seq, freq, codebook_size), dtype=jnp.float32)
    weight = jax.random.normal(kw, (out_features, codebook_size), dtype=jnp.float32)

    y = jax.block_until_ready(codebook_mask_head(x, weight))
    y_ref = jnp.einsum("bsfc,oc->bsfo", x, weight).squeeze(-1)
    assert y.shape == (batch, seq, freq), y.shape
    assert jnp.allclose(y, y_ref, atol=1e-5, rtol=1e-5)

    # --- multi-output case (no squeeze), packed path with O > 1 -------------
    x2 = jax.random.normal(kx2, (4, 8, codebook_size), dtype=jnp.float32)
    w2 = jax.random.normal(kw2, (3, codebook_size), dtype=jnp.float32)
    y2 = jax.block_until_ready(codebook_mask_head(x2, w2))
    y2_ref = jnp.einsum("bsc,oc->bso", x2, w2)
    assert y2.shape == (4, 8, 3), y2.shape
    assert jnp.allclose(y2, y2_ref, atol=1e-5, rtol=1e-5)

    # --- ragged row count: packed bulk + plain-JAX tail ----------------------
    x3 = jax.random.normal(kx3, (3, 7, codebook_size), dtype=jnp.float32)
    y3 = jax.block_until_ready(codebook_mask_head(x3, weight))
    y3_ref = jnp.einsum("bsc,oc->bso", x3, weight).squeeze(-1)
    assert y3.shape == (3, 7), y3.shape
    assert jnp.allclose(y3, y3_ref, atol=1e-5, rtol=1e-5)

    print("KERNEL_OK")
</pallas_src>

<mosaic_0001>
module attributes {stable_mosaic.version = 11 : i64} {
  func.func @_codebook_kernel(%arg0: i32, %arg1: memref<64x128xf32, #tpu.memory_space<vmem>>, %arg2: memref<128x4xf32, #tpu.memory_space<vmem>>, %arg3: memref<64x4xf32, #tpu.memory_space<vmem>>) attributes {dimension_semantics = [#tpu.dimension_semantics<parallel>], iteration_bounds = array<i64: 1>, scalar_prefetch = 0 : i64, scratch_operands = 0 : i64, tpu.core_type = #tpu.core_type<tc>, window_params = [{transform_indices = @transform_0, window_bounds = array<i64: 64, 128>}, {pipeline_mode = #tpu.pipeline_mode<synchronous>, transform_indices = @transform_1, window_bounds = array<i64: 128, 4>}, {transform_indices = @transform_2, window_bounds = array<i64: 64, 4>}]} {
    %c0 = arith.constant 0 : index
    %c0_0 = arith.constant 0 : index
    %0 = vector.load %arg1[%c0, %c0_0] : memref<64x128xf32, #tpu.memory_space<vmem>>, vector<64x128xf32>
    %c0_1 = arith.constant 0 : index
    %c0_2 = arith.constant 0 : index
    %1 = vector.load %arg2[%c0_1, %c0_2] : memref<128x4xf32, #tpu.memory_space<vmem>>, vector<128x4xf32>
    %cst = arith.constant dense<0.000000e+00> : vector<64x4xf32>
    %2 = tpu.matmul %0, %1, %cst {dimension_numbers = #tpu.dot_dimension_numbers<[1], [0], [0], [1], [0, 0, 1, 1], [], []>} : vector<64x128xf32>, vector<128x4xf32>, vector<64x4xf32> -> vector<64x4xf32>
    %c0_3 = arith.constant 0 : index
    %c0_4 = arith.constant 0 : index
    %3 = vector.load %arg3[%c0_3, %c0_4] : memref<64x4xf32, #tpu.memory_space<vmem>>, vector<64x4xf32>
    tpu.vector_store %arg3[%c0_3, %c0_4], %2 {strides = array<i32>} : memref<64x4xf32, #tpu.memory_space<vmem>>, vector<64x4xf32>,
    return
  }
  func.func @transform_0(%arg0: i32) -> (i32, i32) {
    %c0_i32 = arith.constant 0 : i32
    %c0_i32_0 = arith.constant 0 : i32
    return %arg0, %c0_i32 : i32, i32
  }
  func.func @transform_1(%arg0: i32) -> (i32, i32) {
    %c0_i32 = arith.constant 0 : i32
    %c0_i32_0 = arith.constant 0 : i32
    %c0_i32_1 = arith.constant 0 : i32
    return %c0_i32, %c0_i32_0 : i32, i32
  }
  func.func @transform_2(%arg0: i32) -> (i32, i32) {
    %c0_i32 = arith.constant 0 : i32
    %c0_i32_0 = arith.constant 0 : i32
    return %arg0, %c0_i32 : i32, i32
  }
}

</mosaic_0001>

<llo_original>
// kernel: codebook_mask_head.1
$region0: #{codebook_mask_head.1}
  #allocation0 [shape = 'u32[]', space=smem, size = 0x4, offset = 0x4, fixed_abs, tag = 'smem constant byte address 0x4 - core index']
  #allocation1 [shape = 'u32[144,128]{1,0:T(1,128)}', space=vmem, size = 0x12000, scoped, tag = 'internal scratch']
  %s0 = inlined_call_operand.vmem [shape: f32[64,128], index: 0, kind: input, shape index: {}]
  %s1 = inlined_call_operand.vmem [shape: f32[128,4], index: 1, kind: input, shape index: {}]
  %s2 = inlined_call_operand.vmem [shape: f32[64,4], index: 2, kind: output, shape index: {}]
  %s3 = sld [smem:[#allocation0]]
  $region18: #{codebook_mask_head.1} parent=0
    _
  %s5 = ssub.s32 1, %s3
  %s6 = scalar_select 0, %s5, %s3
  // Predicated region
  $region2: #{codebook_mask_head.1} parent=0 // pred_check
    _
  $region3: #{codebook_mask_head.1} parent=0 // pred_check_branch
    %8 = sbr.rel (0) target = $region5
  $region4: #{codebook_mask_head.1} parent=0 // pred_region
    _
  $region5: #{codebook_mask_head.1} parent=0 // pred_fallthru
    _
  // Predicated region
  $region6: #{codebook_mask_head.1} parent=0 // pred_check
    _
  $region7: #{codebook_mask_head.1} parent=0 // pred_check_branch
    %10 = sbr.rel (0) target = $region9
  $region8: #{codebook_mask_head.1} parent=0 // pred_region
    _
  $region9: #{codebook_mask_head.1} parent=0 // pred_fallthru
    _
  %v11 = vld [vmem:[%s0] sm:$0xff]
  %v12 = vld [vmem:[%s0 + $0x8] sm:$0xff]
  %v13 = vld [vmem:[%s0 + $0x10] sm:$0xff]
  %v14 = vld [vmem:[%s0 + $0x18] sm:$0xff]
  %v15 = vld [vmem:[%s0 + $0x20] sm:$0xff]
  %v16 = vld [vmem:[%s0 + $0x28] sm:$0xff]
  %v17 = vld [vmem:[%s0 + $0x30] sm:$0xff]
  %v18 = vld [vmem:[%s0 + $0x38] sm:$0xff]
  %v19 = vld [vmem:[%s1] sm:$0xff]
  %v20 = vld [vmem:[%s1 + $0x8] sm:$0xff]
  %v21 = vld [vmem:[%s1 + $0x10] sm:$0xff]
  %v22 = vld [vmem:[%s1 + $0x18] sm:$0xff]
  %v23 = vld [vmem:[%s1 + $0x20] sm:$0xff]
  %v24 = vld [vmem:[%s1 + $0x28] sm:$0xff]
  %v25 = vld [vmem:[%s1 + $0x30] sm:$0xff]
  %v26 = vld [vmem:[%s1 + $0x38] sm:$0xff]
  %v27 = vld [vmem:[%s1 + $0x40] sm:$0xff]
  %v28 = vld [vmem:[%s1 + $0x48] sm:$0xff]
  %v29 = vld [vmem:[%s1 + $0x50] sm:$0xff]
  %v30 = vld [vmem:[%s1 + $0x58] sm:$0xff]
  %v31 = vld [vmem:[%s1 + $0x60] sm:$0xff]
  %v32 = vld [vmem:[%s1 + $0x68] sm:$0xff]
  %v33 = vld [vmem:[%s1 + $0x70] sm:$0xff]
  %v34 = vld [vmem:[%s1 + $0x78] sm:$0xff]
  %35 = vmatprep.subr.mxu0 0.0
  %36 = vmatpush1.msra.mxu0 %v34
  %37 = vmatprep.subr.mxu0 0.0
  %38 = vmatpush1.msra.mxu0 %v33
  %39 = vmatprep.subr.mxu0 0.0
  %40 = vmatpush1.msra.mxu0 %v32
  %41 = vmatprep.subr.mxu0 0.0
  %42 = vmatpush1.msra.mxu0 %v31
  %43 = vmatprep.subr.mxu0 0.0
  %44 = vmatpush1.msra.mxu0 %v30
  %45 = vmatprep.subr.mxu0 0.0
  %46 = vmatpush1.msra.mxu0 %v29
  %47 = vmatprep.subr.mxu0 0.0
  %48 = vmatpush1.msra.mxu0 %v28
  %49 = vmatprep.subr.mxu0 0.0
  %50 = vmatpush1.msra.mxu0 %v27
  %51 = vmatprep.subr.mxu0 0.0
  %52 = vmatpush1.msra.mxu0 %v26
  %53 = vmatprep.subr.mxu0 0.0
  %54 = vmatpush1.msra.mxu0 %v25
  %55 = vmatprep.subr.mxu0 0.0
  %56 = vmatpush1.msra.mxu0 %v24
  %57 = vmatprep.subr.mxu0 0.0
  %58 = vmatpush1.msra.mxu0 %v23
  %59 = vmatprep.subr.mxu0 0.0
  %60 = vmatpush1.msra.mxu0 %v22
  %61 = vmatprep.subr.mxu0 0.0
  %62 = vmatpush1.msra.mxu0 %v21
  %63 = vmatprep.subr.mxu0 0.0
  %64 = vmatpush1.msra.mxu0 %v20
  %65 = vmatprep.subr.mxu0 0.0
  %66 = vmatpush1.msra.mxu0 %v19
  %67 = vmatprep.subr.mxu0 0.0
  %68 = vmatpush2.msra.mxu0 0.0
  %69 = vmatprep.subr.mxu0 0.0
  %70 = vmatpush2.msra.mxu0 0.0
  %71 = vmatprep.subr.mxu0 0.0
  %72 = vmatpush2.msra.mxu0 0.0
  %73 = vmatprep.subr.mxu0 0.0
  %74 = vmatpush2.msra.mxu0 0.0
  %75 = vmatprep.subr.mxu0 0.0
  %76 = vmatpush2.msra.mxu0 0.0
  %77 = vmatprep.subr.mxu0 0.0
  %78 = vmatpush2.msra.mxu0 0.0
  %79 = vmatprep.subr.mxu0 0.0
  %80 = vmatpush2.msra.mxu0 0.0
  %81 = vmatprep.subr.mxu0 0.0
  %82 = vmatpush2.msra.mxu0 0.0
  %83 = vmatprep.subr.mxu0 0.0
  %84 = vmatpush2.msra.mxu0 0.0
  %85 = vmatprep.subr.mxu0 0.0
  %86 = vmatpush2.msra.mxu0 0.0
  %87 = vmatprep.subr.mxu0 0.0
  %88 = vmatpush2.msra.mxu0 0.0
  %89 = vmatprep.subr.mxu0 0.0
  %90 = vmatpush2.msra.mxu0 0.0
  %91 = vmatprep.subr.mxu0 0.0
  %92 = vmatpush2.msra.mxu0 0.0
  %93 = vmatprep.subr.mxu0 0.0
  %94 = vmatpush2.msra.mxu0 0.0
  %95 = vmatprep.subr.mxu0 0.0
  %96 = vmatpush2.msra.mxu0 0.0
  %97 = vmatprep.subr.mxu0 0.0
  %98 = vmatpush2.msra.mxu0 0.0
  %99 = vmatprep.mubr.f32.mxu0 0.0
  %100 = vmatmul.mubr.f32.gmra.mxu0 %v11
  %v101 = vpop.f32.mrf.mxu0
  %v102 = vadd.f32 0.0, %v101
  %v103 = vpop.f32.mrf.mxu0
  %104 = vmatprep.mubr.f32.mxu0 0.0
  %105 = vmatmul.mubr.f32.gmra.mxu0 %v12
  %v106 = vpop.f32.mrf.mxu0
  %v107 = vadd.f32 0.0, %v106
  %v108 = vpop.f32.mrf.mxu0
  %109 = vmatprep.mubr.f32.mxu0 0.0
  %110 = vmatmul.mubr.f32.gmra.mxu0 %v13
  %v111 = vpop.f32.mrf.mxu0
  %v112 = vadd.f32 0.0, %v111
  %v113 = vpop.f32.mrf.mxu0
  %114 = vmatprep.mubr.f32.mxu0 0.0
  %115 = vmatmul.mubr.f32.gmra.mxu0 %v14
  %v116 = vpop.f32.mrf.mxu0
  %v117 = vadd.f32 0.0, %v116
  %v118 = vpop.f32.mrf.mxu0
  %119 = vmatprep.mubr.f32.mxu0 0.0
  %120 = vmatmul.mubr.f32.gmra.mxu0 %v15
  %v121 = vpop.f32.mrf.mxu0
  %v122 = vadd.f32 0.0, %v121
  %v123 = vpop.f32.mrf.mxu0
  %124 = vmatprep.mubr.f32.mxu0 0.0
  %125 = vmatmul.mubr.f32.gmra.mxu0 %v16
  %v126 = vpop.f32.mrf.mxu0
  %v127 = vadd.f32 0.0, %v126
  %v128 = vpop.f32.mrf.mxu0
  %129 = vmatprep.mubr.f32.mxu0 0.0
  %130 = vmatmul.mubr.f32.gmra.mxu0 %v17
  %v131 = vpop.f32.mrf.mxu0
  %v132 = vadd.f32 0.0, %v131
  %v133 = vpop.f32.mrf.mxu0
  %134 = vmatprep.mubr.f32.mxu0 0.0
  %135 = vmatmul.mubr.f32.gmra.mxu0 %v18
  %v136 = vpop.f32.mrf.mxu0
  %v137 = vadd.f32 0.0, %v136
  %v138 = vpop.f32.mrf.mxu0
  %139 = vdwg.mxu0
  %vm140 = vcmask 31744
  %141 = vst.msk [vmem:[%s2] sm:$0xff] %vm140, %v102
  %142 = vst.msk [vmem:[%s2 + $0x8] sm:$0xff] %vm140, %v107
  %143 = vst.msk [vmem:[%s2 + $0x10] sm:$0xff] %vm140, %v112
  %144 = vst.msk [vmem:[%s2 + $0x18] sm:$0xff] %vm140, %v117
  %145 = vst.msk [vmem:[%s2 + $0x20] sm:$0xff] %vm140, %v122
  %146 = vst.msk [vmem:[%s2 + $0x28] sm:$0xff] %vm140, %v127
  %147 = vst.msk [vmem:[%s2 + $0x30] sm:$0xff] %vm140, %v132
  %148 = vst.msk [vmem:[%s2 + $0x38] sm:$0xff] %vm140, %v137
  // Predicated region
  $region10: #{codebook_mask_head.1} parent=0 // pred_check
    _
  $region11: #{codebook_mask_head.1} parent=0 // pred_check_branch
    %150 = sbr.rel (0) target = $region13
  $region12: #{codebook_mask_head.1} parent=0 // pred_region
    _
  $region13: #{codebook_mask_head.1} parent=0 // pred_fallthru
    _
  // Predicated region
  $region14: #{codebook_mask_head.1} parent=0 // pred_check
    _
  $region15: #{codebook_mask_head.1} parent=0 // pred_check_branch
    %152 = sbr.rel (0) target = $region17
  $region16: #{codebook_mask_head.1} parent=0 // pred_region
    _
  $region17: #{codebook_mask_head.1} parent=0 // pred_fallthru
    _

</llo_original>
